<compile_context>
chip_gen: v7x
topology: tpu7x:2x2x1
jax: 0.10.0
libtpu: 0.0.40
codegen_flags: <defaults>
</compile_context>

<pallas_src>
import jax
import jax.numpy as jnp
from jax.experimental import pallas as pl
from jax.experimental.pallas import tpu as pltpu


def _make_kernel(C, apply_gamma):
    """Fused preprocess + separable bilinear resize kernel.

    Refs:
      scale (C,) SMEM, gamma (1,) SMEM,
      ry tile (TH, h_ori) compute_dtype, rxt (w_ori, W) compute_dtype,
      img (1, C, h_ori, w_ori) original dtype,
      out (1, C, TH, W) out_dtype,
      xg scratch (C, h_ori, W) compute_dtype  (column-resized, jittered plane).
    """

    def kernel(scale_ref, gamma_ref, ry_ref, rxt_ref, img_ref, out_ref, xg_ref):
        t = pl.program_id(1)

        # --- once per image: jitter (+ gamma) at full res, then column resize ---
        @pl.when(t == 0)
        def _():
            for c in range(C):
                xc = img_ref[0, c].astype(jnp.float32) * scale_ref[c]
                if apply_gamma:
                    g = gamma_ref[0]
                    safe = jnp.where(xc > 0.0, xc, 1.0)
                    xc = jnp.where(xc > 0.0, jnp.exp(g * jnp.log(safe)), 0.0)
                col = jnp.dot(xc.astype(rxt_ref.dtype), rxt_ref[...],
                              preferred_element_type=jnp.float32)
                xg_ref[c] = col.astype(xg_ref.dtype)

        # --- per H-tile: row resize only (one MXU matmul per channel) ---
        for c in range(C):
            res = jnp.dot(ry_ref[...], xg_ref[c],
                          preferred_element_type=jnp.float32)
            out_ref[0, c] = res.astype(out_ref.dtype)

    return kernel


def _bilinear_matrix(dst, src):
    # cv2.INTER_LINEAR coordinate convention: src_f = (dst_i + 0.5) * src/dst - 0.5
    d = jnp.arange(dst)
    f = (d + 0.5) * (float(src) / float(dst)) - 0.5
    i0 = jnp.floor(f).astype(jnp.int32)
    frac = (f - i0).astype(jnp.float32)
    frac = jnp.where(i0 < 0, 0.0, frac)            # clamp-to-edge at top/left
    i0c = jnp.clip(i0, 0, src - 1)
    i1c = jnp.clip(i0 + 1, 0, src - 1)             # clamp-to-edge at bottom/right
    m = jnp.zeros((dst, src), jnp.float32)
    m = m.at[d, i0c].add(1.0 - frac)
    m = m.at[d, i1c].add(frac)
    return m


def _pick_row_tile(H, max_rows=256):
    """Largest divisor of H that is a multiple of 8 and <= max_rows (else H)."""
    if H <= max_rows or H % 8 != 0:
        return H
    start = max_rows - (max_rows % 8)
    for th in range(start, 7, -8):
        if H % th == 0:
            return th
    return H


def yolo_preprocess(im_data, gt_boxes, size_index, input_size, phase,
                    jitter=0.1, key=None,
                    compute_dtype=jnp.bfloat16, out_dtype=jnp.float32):
    """JAX/Pallas equivalent of _YOLOPreprocessLayer.forward."""
    B, C, h_ori, w_ori = im_data.shape
    W, H = input_size[size_index]

    if phase == "train":
        k1, k2 = jax.random.split(key)
        t = jax.random.uniform(k1, (3,)) * 2.0 - 1.0          # torch.rand(3)*2-1
        up = jax.random.uniform(k2, ()) * 2.0 - 1.0           # torch.rand(1)*2-1
        mx = 255.0 * (1.0 + jitter)
        scale = ((1.0 + t * jitter) / mx).astype(jnp.float32)  # fold /mx into scale
        gamma = jnp.reshape(1.0 + up * 0.5, (1,)).astype(jnp.float32)
        apply_gamma = True
    else:
        scale = jnp.full((C,), 1.0 / 255.0, jnp.float32)
        gamma = jnp.ones((1,), jnp.float32)
        apply_gamma = False                                    # pow path traced out

    ry = _bilinear_matrix(H, h_ori).astype(compute_dtype)      # (H, h_ori)
    rxt = _bilinear_matrix(W, w_ori).T.astype(compute_dtype)   # (w_ori, W)

    TH = _pick_row_tile(H)
    n_t = H // TH

    # Explicit VMEM budget (double-buffered pipelined operands + scratch + slack).
    esz = jnp.dtype(compute_dtype).itemsize
    isz = jnp.dtype(im_data.dtype).itemsize
    osz = jnp.dtype(out_dtype).itemsize
    vmem_est = (2 * C * h_ori * w_ori * isz        # source plane (double-buffered)
                + C * h_ori * W * esz              # xg scratch (col-resized)
                + 2 * TH * h_ori * esz             # Ry tile
                + 2 * w_ori * W * esz              # Rx^T
                + 2 * C * TH * W * osz             # output tile
                + 3 * max(h_ori, TH) * max(w_ori, W) * 4)  # live f32 intermediates
    vmem_limit = int(min(max(2 * vmem_est, 16 * 2**20), 64 * 2**20))

    out = pl.pallas_call(
        _make_kernel(C, apply_gamma),
        out_shape=jax.ShapeDtypeStruct((B, C, H, W), out_dtype),
        grid=(B, n_t),
        in_specs=[
            pl.BlockSpec(memory_space=pltpu.MemorySpace.SMEM),            # scale (C,)
            pl.BlockSpec(memory_space=pltpu.MemorySpace.SMEM),            # gamma (1,)
            pl.BlockSpec((TH, h_ori), lambda b, t: (t, 0)),               # Ry tile
            pl.BlockSpec((w_ori, W), lambda b, t: (0, 0)),                # Rx^T (constant)
            pl.BlockSpec((1, C, h_ori, w_ori), lambda b, t: (b, 0, 0, 0)),  # plane, resident per b
        ],
        out_specs=pl.BlockSpec((1, C, TH, W), lambda b, t: (b, 0, t, 0)),
        scratch_shapes=[pltpu.VMEM((C, h_ori, W), compute_dtype)],
        compiler_params=pltpu.CompilerParams(
            dimension_semantics=("parallel", "arbitrary"),
            vmem_limit_bytes=vmem_limit),
    )(scale, gamma, ry, rxt, im_data)

    if phase == "train":
        # gt_boxes[..., :4][:, 0::2] *= W/w_ori ; [..., 1::2] *= H/h_ori
        sx = float(W) / float(w_ori)
        sy = float(H) / float(h_ori)
        extra = gt_boxes.shape[-1] - 4
        box_scale = jnp.array([sx, sy, sx, sy] + [1.0] * extra, gt_boxes.dtype)
        gt_boxes = gt_boxes * box_scale

    return out, gt_boxes


if __name__ == "__main__":
    key = jax.random.PRNGKey(0)
    k_im, k_box, k_rand = jax.random.split(key, 3)

    B, C, h_ori, w_ori = 2, 3, 16, 16
    n_boxes = 8
    im_data = jax.random.uniform(k_im, (B, C, h_ori, w_ori), jnp.float32) * 255.0
    gt_boxes = jax.random.uniform(k_box, (B, n_boxes, 5), jnp.float32) * float(w_ori)

    # deterministic "mix_args" config
    input_size = [(32, 32), (16, 16)]
    size_index = 0
    W, H = input_size[size_index]

    # train phase: jitter + gamma + resize + box rescale
    out_im, out_boxes = yolo_preprocess(
        im_data, gt_boxes, size_index=size_index, input_size=input_size,
        phase="train", jitter=0.1, key=k_rand)
    jax.block_until_ready(out_im)
    jax.block_until_ready(out_boxes)
    assert out_im.shape == (B, 3, H, W) and out_im.dtype == jnp.float32
    assert out_boxes.shape == gt_boxes.shape

    # eval phase: /255 + resize only (gamma path statically removed)
    out_im_eval, eval_boxes = yolo_preprocess(
        im_data, gt_boxes, size_index=size_index, input_size=input_size,
        phase="test", jitter=0.1, key=k_rand)
    jax.block_until_ready(out_im_eval)
    assert out_im_eval.shape == (B, 3, H, W)
    assert bool(jnp.all(eval_boxes == gt_boxes))   # boxes untouched in eval

    # numerical sanity vs. pure-JAX separable bilinear reference (eval path);
    # tolerance covers the bf16 MXU path (weights sum to 1 -> ~1e-3 abs error).
    ryf = _bilinear_matrix(H, h_ori)
    rxf = _bilinear_matrix(W, w_ori)
    ref = jnp.einsum("Hh,bchw,Ww->bcHW", ryf, im_data / 255.0, rxf)
    max_err = float(jnp.max(jnp.abs(out_im_eval - ref)))
    assert max_err < 5e-2, f"eval resize mismatch: {max_err}"

    print("KERNEL_OK")
</pallas_src>

<mosaic_0001>
module attributes {stable_mosaic.version = 11 : i64} {
  func.func @kernel(%arg0: i32, %arg1: i32, %arg2: memref<3xf32, #tpu.memory_space<smem>>, %arg3: memref<1xf32, #tpu.memory_space<smem>>, %arg4: memref<32x16xbf16, #tpu.memory_space<vmem>>, %arg5: memref<16x32xbf16, #tpu.memory_space<vmem>>, %arg6: memref<1x3x16x16xf32, #tpu.memory_space<vmem>>, %arg7: memref<1x3x32x32xf32, #tpu.memory_space<vmem>>, %arg8: memref<3x16x32xbf16, #tpu.memory_space<vmem>>) attributes {dimension_semantics = [#tpu.dimension_semantics<parallel>, #tpu.dimension_semantics<arbitrary>], iteration_bounds = array<i64: 2, 1>, scalar_prefetch = 0 : i64, scratch_operands = 1 : i64, tpu.core_type = #tpu.core_type<tc>, window_params = [{transform_indices = @transform_0, window_bounds = array<i64: 3>}, {transform_indices = @transform_1, window_bounds = array<i64: 1>}, {transform_indices = @transform_2, window_bounds = array<i64: 32, 16>}, {pipeline_mode = #tpu.pipeline_mode<synchronous>, transform_indices = @transform_3, window_bounds = array<i64: 16, 32>}, {transform_indices = @transform_4, window_bounds = array<i64: 1, 3, 16, 16>}, {transform_indices = @transform_5, window_bounds = array<i64: 1, 3, 32, 32>}]} {
    %c0_i32 = arith.constant 0 : i32
    %0 = arith.cmpi eq, %arg1, %c0_i32 : i32
    %1 = arith.extui %0 : i1 to i32
    %c0_i32_0 = arith.constant 0 : i32
    %2 = arith.cmpi ne, %1, %c0_i32_0 : i32
    scf.if %2 {
      %c0_27 = arith.constant 0 : index
      %c0_28 = arith.constant 0 : index
      %c0_29 = arith.constant 0 : index
      %c0_30 = arith.constant 0 : index
      %24 = vector.load %arg6[%c0_27, %c0_28, %c0_29, %c0_30] : memref<1x3x16x16xf32, #tpu.memory_space<vmem>>, vector<1x1x16x16xf32>
      %25 = vector.shape_cast %24 : vector<1x1x16x16xf32> to vector<16x16xf32>
      %c0_31 = arith.constant 0 : index
      %26 = memref.load %arg2[%c0_31] : memref<3xf32, #tpu.memory_space<smem>>
      %27 = vector.broadcast %26 : f32 to vector<16x16xf32>
      %28 = arith.mulf %25, %27 : vector<16x16xf32>
      %c0_32 = arith.constant 0 : index
      %29 = memref.load %arg3[%c0_32] : memref<1xf32, #tpu.memory_space<smem>>
      %cst_33 = arith.constant 0.000000e+00 : f32
      %30 = vector.broadcast %cst_33 : f32 to vector<16x16xf32>
      %31 = arith.cmpf ogt, %28, %30 : vector<16x16xf32>
      %cst_34 = arith.constant 1.000000e+00 : f32
      %32 = vector.broadcast %cst_34 : f32 to vector<16x16xf32>
      %33 = arith.select %31, %28, %32 : vector<16x16xi1>, vector<16x16xf32>
      %cst_35 = arith.constant 0.000000e+00 : f32
      %34 = vector.broadcast %cst_35 : f32 to vector<16x16xf32>
      %35 = arith.cmpf ogt, %28, %34 : vector<16x16xf32>
      %36 = math.log %33 : vector<16x16xf32>
      %37 = vector.broadcast %29 : f32 to vector<16x16xf32>
      %38 = arith.mulf %37, %36 : vector<16x16xf32>
      %39 = math.exp %38 : vector<16x16xf32>
      %cst_36 = arith.constant 0.000000e+00 : f32
      %40 = vector.broadcast %cst_36 : f32 to vector<16x16xf32>
      %41 = arith.select %35, %39, %40 : vector<16x16xi1>, vector<16x16xf32>
      %42 = arith.truncf %41 : vector<16x16xf32> to vector<16x16xbf16>
      %c0_37 = arith.constant 0 : index
      %c0_38 = arith.constant 0 : index
      %43 = vector.load %arg5[%c0_37, %c0_38] : memref<16x32xbf16, #tpu.memory_space<vmem>>, vector<16x32xbf16>
      %cst_39 = arith.constant dense<0.000000e+00> : vector<16x32xf32>
      %44 = tpu.matmul %42, %43, %cst_39 {dimension_numbers = #tpu.dot_dimension_numbers<[1], [0], [0], [1], [0, 0, 1, 1], [], []>} : vector<16x16xbf16>, vector<16x32xbf16>, vector<16x32xf32> -> vector<16x32xf32>
      %45 = arith.truncf %44 : vector<16x32xf32> to vector<16x32xbf16>
      %c0_40 = arith.constant 0 : index
      %c0_41 = arith.constant 0 : index
      %c0_42 = arith.constant 0 : index
      %46 = vector.load %arg8[%c0_40, %c0_41, %c0_42] : memref<3x16x32xbf16, #tpu.memory_space<vmem>>, vector<1x16x32xbf16>
      %47 = vector.shape_cast %46 : vector<1x16x32xbf16> to vector<16x32xbf16>
      %48 = vector.shape_cast %45 : vector<16x32xbf16> to vector<1x16x32xbf16>
      tpu.vector_store %arg8[%c0_40, %c0_41, %c0_42], %48 {strides = array<i32>} : memref<3x16x32xbf16, #tpu.memory_space<vmem>>, vector<1x16x32xbf16>,
      %c0_43 = arith.constant 0 : index
      %c1_44 = arith.constant 1 : index
      %c0_45 = arith.constant 0 : index
      %c0_46 = arith.constant 0 : index
      %49 = vector.load %arg6[%c0_43, %c1_44, %c0_45, %c0_46] : memref<1x3x16x16xf32, #tpu.memory_space<vmem>>, vector<1x1x16x16xf32>
      %50 = vector.shape_cast %49 : vector<1x1x16x16xf32> to vector<16x16xf32>
      %c1_47 = arith.constant 1 : index
      %51 = memref.load %arg2[%c1_47] : memref<3xf32, #tpu.memory_space<smem>>
      %52 = vector.broadcast %51 : f32 to vector<16x16xf32>
      %53 = arith.mulf %50, %52 : vector<16x16xf32>
      %c0_48 = arith.constant 0 : index
      %54 = memref.load %arg3[%c0_48] : memref<1xf32, #tpu.memory_space<smem>>
      %cst_49 = arith.constant 0.000000e+00 : f32
      %55 = vector.broadcast %cst_49 : f32 to vector<16x16xf32>
      %56 = arith.cmpf ogt, %53, %55 : vector<16x16xf32>
      %cst_50 = arith.constant 1.000000e+00 : f32
      %57 = vector.broadcast %cst_50 : f32 to vector<16x16xf32>
      %58 = arith.select %56, %53, %57 : vector<16x16xi1>, vector<16x16xf32>
      %cst_51 = arith.constant 0.000000e+00 : f32
      %59 = vector.broadcast %cst_51 : f32 to vector<16x16xf32>
      %60 = arith.cmpf ogt, %53, %59 : vector<16x16xf32>
      %61 = math.log %58 : vector<16x16xf32>
      %62 = vector.broadcast %54 : f32 to vector<16x16xf32>
      %63 = arith.mulf %62, %61 : vector<16x16xf32>
      %64 = math.exp %63 : vector<16x16xf32>
      %cst_52 = arith.constant 0.000000e+00 : f32
      %65 = vector.broadcast %cst_52 : f32 to vector<16x16xf32>
      %66 = arith.select %60, %64, %65 : vector<16x16xi1>, vector<16x16xf32>
      %67 = arith.truncf %66 : vector<16x16xf32> to vector<16x16xbf16>
      %c0_53 = arith.constant 0 : index
      %c0_54 = arith.constant 0 : index
      %68 = vector.load %arg5[%c0_53, %c0_54] : memref<16x32xbf16, #tpu.memory_space<vmem>>, vector<16x32xbf16>
      %cst_55 = arith.constant dense<0.000000e+00> : vector<16x32xf32>
      %69 = tpu.matmul %67, %68, %cst_55 {dimension_numbers = #tpu.dot_dimension_numbers<[1], [0], [0], [1], [0, 0, 1, 1], [], []>} : vector<16x16xbf16>, vector<16x32xbf16>, vector<16x32xf32> -> vector<16x32xf32>
      %70 = arith.truncf %69 : vector<16x32xf32> to vector<16x32xbf16>
      %c1_56 = arith.constant 1 : index
      %c0_57 = arith.constant 0 : index
      %c0_58 = arith.constant 0 : index
      %71 = vector.load %arg8[%c1_56, %c0_57, %c0_58] : memref<3x16x32xbf16, #tpu.memory_space<vmem>>, vector<1x16x32xbf16>
      %72 = vector.shape_cast %71 : vector<1x16x32xbf16> to vector<16x32xbf16>
      %73 = vector.shape_cast %70 : vector<16x32xbf16> to vector<1x16x32xbf16>
      tpu.vector_store %arg8[%c1_56, %c0_57, %c0_58], %73 {strides = array<i32>} : memref<3x16x32xbf16, #tpu.memory_space<vmem>>, vector<1x16x32xbf16>,
      %c0_59 = arith.constant 0 : index
      %c2_60 = arith.constant 2 : index
      %c0_61 = arith.constant 0 : index
      %c0_62 = arith.constant 0 : index
      %74 = vector.load %arg6[%c0_59, %c2_60, %c0_61, %c0_62] : memref<1x3x16x16xf32, #tpu.memory_space<vmem>>, vector<1x1x16x16xf32>
      %75 = vector.shape_cast %74 : vector<1x1x16x16xf32> to vector<16x16xf32>
      %c2_63 = arith.constant 2 : index
      %76 = memref.load %arg2[%c2_63] : memref<3xf32, #tpu.memory_space<smem>>
      %77 = vector.broadcast %76 : f32 to vector<16x16xf32>
      %78 = arith.mulf %75, %77 : vector<16x16xf32>
      %c0_64 = arith.constant 0 : index
      %79 = memref.load %arg3[%c0_64] : memref<1xf32, #tpu.memory_space<smem>>
      %cst_65 = arith.constant 0.000000e+00 : f32
      %80 = vector.broadcast %cst_65 : f32 to vector<16x16xf32>
      %81 = arith.cmpf ogt, %78, %80 : vector<16x16xf32>
      %cst_66 = arith.constant 1.000000e+00 : f32
      %82 = vector.broadcast %cst_66 : f32 to vector<16x16xf32>
      %83 = arith.select %81, %78, %82 : vector<16x16xi1>, vector<16x16xf32>
      %cst_67 = arith.constant 0.000000e+00 : f32
      %84 = vector.broadcast %cst_67 : f32 to vector<16x16xf32>
      %85 = arith.cmpf ogt, %78, %84 : vector<16x16xf32>
      %86 = math.log %83 : vector<16x16xf32>
      %87 = vector.broadcast %79 : f32 to vector<16x16xf32>
      %88 = arith.mulf %87, %86 : vector<16x16xf32>
      %89 = math.exp %88 : vector<16x16xf32>
      %cst_68 = arith.constant 0.000000e+00 : f32
      %90 = vector.broadcast %cst_68 : f32 to vector<16x16xf32>
      %91 = arith.select %85, %89, %90 : vector<16x16xi1>, vector<16x16xf32>
      %92 = arith.truncf %91 : vector<16x16xf32> to vector<16x16xbf16>
      %c0_69 = arith.constant 0 : index
      %c0_70 = arith.constant 0 : index
      %93 = vector.load %arg5[%c0_69, %c0_70] : memref<16x32xbf16, #tpu.memory_space<vmem>>, vector<16x32xbf16>
      %cst_71 = arith.constant dense<0.000000e+00> : vector<16x32xf32>
      %94 = tpu.matmul %92, %93, %cst_71 {dimension_numbers = #tpu.dot_dimension_numbers<[1], [0], [0], [1], [0, 0, 1, 1], [], []>} : vector<16x16xbf16>, vector<16x32xbf16>, vector<16x32xf32> -> vector<16x32xf32>
      %95 = arith.truncf %94 : vector<16x32xf32> to vector<16x32xbf16>
      %c2_72 = arith.constant 2 : index
      %c0_73 = arith.constant 0 : index
      %c0_74 = arith.constant 0 : index
      %96 = vector.load %arg8[%c2_72, %c0_73, %c0_74] : memref<3x16x32xbf16, #tpu.memory_space<vmem>>, vector<1x16x32xbf16>
      %97 = vector.shape_cast %96 : vector<1x16x32xbf16> to vector<16x32xbf16>
      %98 = vector.shape_cast %95 : vector<16x32xbf16> to vector<1x16x32xbf16>
      tpu.vector_store %arg8[%c2_72, %c0_73, %c0_74], %98 {strides = array<i32>} : memref<3x16x32xbf16, #tpu.memory_space<vmem>>, vector<1x16x32xbf16>,
    } else {
    }
    %c0 = arith.constant 0 : index
    %c0_1 = arith.constant 0 : index
    %3 = vector.load %arg4[%c0, %c0_1] : memref<32x16xbf16, #tpu.memory_space<vmem>>, vector<32x16xbf16>
    %c0_2 = arith.constant 0 : index
    %c0_3 = arith.constant 0 : index
    %c0_4 = arith.constant 0 : index
    %4 = vector.load %arg8[%c0_2, %c0_3, %c0_4] : memref<3x16x32xbf16, #tpu.memory_space<vmem>>, vector<1x16x32xbf16>
    %5 = vector.shape_cast %4 : vector<1x16x32xbf16> to vector<16x32xbf16>
    %cst = arith.constant dense<0.000000e+00> : vector<32x32xf32>
    %6 = tpu.matmul %3, %5, %cst {dimension_numbers = #tpu.dot_dimension_numbers<[1], [0], [0], [1], [0, 0, 1, 1], [], []>} : vector<32x16xbf16>, vector<16x32xbf16>, vector<32x32xf32> -> vector<32x32xf32>
    %c0_5 = arith.constant 0 : index
    %c0_6 = arith.constant 0 : index
    %c0_7 = arith.constant 0 : index
    %c0_8 = arith.constant 0 : index
    %7 = vector.load %arg7[%c0_5, %c0_6, %c0_7, %c0_8] : memref<1x3x32x32xf32, #tpu.memory_space<vmem>>, vector<1x1x32x32xf32>
    %8 = vector.shape_cast %7 : vector<1x1x32x32xf32> to vector<32x32xf32>
    %9 = vector.shape_cast %6 : vector<32x32xf32> to vector<1x1x32x32xf32>
    tpu.vector_store %arg7[%c0_5, %c0_6, %c0_7, %c0_8], %9 {strides = array<i32>} : memref<1x3x32x32xf32, #tpu.memory_space<vmem>>, vector<1x1x32x32xf32>,
    %c0_9 = arith.constant 0 : index
    %c0_10 = arith.constant 0 : index
    %10 = vector.load %arg4[%c0_9, %c0_10] : memref<32x16xbf16, #tpu.memory_space<vmem>>, vector<32x16xbf16>
    %c1 = arith.constant 1 : index
    %c0_11 = arith.constant 0 : index
    %c0_12 = arith.constant 0 : index
    %11 = vector.load %arg8[%c1, %c0_11, %c0_12] : memref<3x16x32xbf16, #tpu.memory_space<vmem>>, vector<1x16x32xbf16>
    %12 = vector.shape_cast %11 : vector<1x16x32xbf16> to vector<16x32xbf16>
    %cst_13 = arith.constant dense<0.000000e+00> : vector<32x32xf32>
    %13 = tpu.matmul %10, %12, %cst_13 {dimension_numbers = #tpu.dot_dimension_numbers<[1], [0], [0], [1], [0, 0, 1, 1], [], []>} : vector<32x16xbf16>, vector<16x32xbf16>, vector<32x32xf32> -> vector<32x32xf32>
    %c0_14 = arith.constant 0 : index
    %c1_15 = arith.constant 1 : index
    %c0_16 = arith.constant 0 : index
    %c0_17 = arith.constant 0 : index
    %14 = vector.load %arg7[%c0_14, %c1_15, %c0_16, %c0_17] : memref<1x3x32x32xf32, #tpu.memory_space<vmem>>, vector<1x1x32x32xf32>
    %15 = vector.shape_cast %14 : vector<1x1x32x32xf32> to vector<32x32xf32>
    %16 = vector.shape_cast %13 : vector<32x32xf32> to vector<1x1x32x32xf32>
    tpu.vector_store %arg7[%c0_14, %c1_15, %c0_16, %c0_17], %16 {strides = array<i32>} : memref<1x3x32x32xf32, #tpu.memory_space<vmem>>, vector<1x1x32x32xf32>,
    %c0_18 = arith.constant 0 : index
    %c0_19 = arith.constant 0 : index
    %17 = vector.load %arg4[%c0_18, %c0_19] : memref<32x16xbf16, #tpu.memory_space<vmem>>, vector<32x16xbf16>
    %c2 = arith.constant 2 : index
    %c0_20 = arith.constant 0 : index
    %c0_21 = arith.constant 0 : index
    %18 = vector.load %arg8[%c2, %c0_20, %c0_21] : memref<3x16x32xbf16, #tpu.memory_space<vmem>>, vector<1x16x32xbf16>
    %19 = vector.shape_cast %18 : vector<1x16x32xbf16> to vector<16x32xbf16>
    %cst_22 = arith.constant dense<0.000000e+00> : vector<32x32xf32>
    %20 = tpu.matmul %17, %19, %cst_22 {dimension_numbers = #tpu.dot_dimension_numbers<[1], [0], [0], [1], [0, 0, 1, 1], [], []>} : vector<32x16xbf16>, vector<16x32xbf16>, vector<32x32xf32> -> vector<32x32xf32>
    %c0_23 = arith.constant 0 : index
    %c2_24 = arith.constant 2 : index
    %c0_25 = arith.constant 0 : index
    %c0_26 = arith.constant 0 : index
    %21 = vector.load %arg7[%c0_23, %c2_24, %c0_25, %c0_26] : memref<1x3x32x32xf32, #tpu.memory_space<vmem>>, vector<1x1x32x32xf32>
    %22 = vector.shape_cast %21 : vector<1x1x32x32xf32> to vector<32x32xf32>
    %23 = vector.shape_cast %20 : vector<32x32xf32> to vector<1x1x32x32xf32>
    tpu.vector_store %arg7[%c0_23, %c2_24, %c0_25, %c0_26], %23 {strides = array<i32>} : memref<1x3x32x32xf32, #tpu.memory_space<vmem>>, vector<1x1x32x32xf32>,
    return
  }
  func.func @transform_0(%arg0: i32, %arg1: i32) -> i32 {
    %c0_i32 = arith.constant 0 : i32
    %c0_i32_0 = arith.constant 0 : i32
    return %c0_i32 : i32
  }
  func.func @transform_1(%arg0: i32, %arg1: i32) -> i32 {
    %c0_i32 = arith.constant 0 : i32
    %c0_i32_0 = arith.constant 0 : i32
    return %c0_i32 : i32
  }
  func.func @transform_2(%arg0: i32, %arg1: i32) -> (i32, i32) {
    %c0_i32 = arith.constant 0 : i32
    %c0_i32_0 = arith.constant 0 : i32
    return %arg1, %c0_i32 : i32, i32
  }
  func.func @transform_3(%arg0: i32, %arg1: i32) -> (i32, i32) {
    %c0_i32 = arith.constant 0 : i32
    %c0_i32_0 = arith.constant 0 : i32
    %c0_i32_1 = arith.constant 0 : i32
    return %c0_i32, %c0_i32_0 : i32, i32
  }
  func.func @transform_4(%arg0: i32, %arg1: i32) -> (i32, i32, i32, i32) {
    %c0_i32 = arith.constant 0 : i32
    %c0_i32_0 = arith.constant 0 : i32
    %c0_i32_1 = arith.constant 0 : i32
    %c0_i32_2 = arith.constant 0 : i32
    return %arg0, %c0_i32, %c0_i32_0, %c0_i32_1 : i32, i32, i32, i32
  }
  func.func @transform_5(%arg0: i32, %arg1: i32) -> (i32, i32, i32, i32) {
    %c0_i32 = arith.constant 0 : i32
    %c0_i32_0 = arith.constant 0 : i32
    %c0_i32_1 = arith.constant 0 : i32
    return %arg0, %c0_i32, %arg1, %c0_i32_0 : i32, i32, i32, i32
  }
}

</mosaic_0001>

<llo_original>
// kernel: tpu_custom_call.1
$region0: #{tpu_custom_call.1}
  #allocation0 [shape = 'u32[]', space=smem, size = 0x4, offset = 0x4, fixed_abs, tag = 'smem constant byte address 0x4 - core index']
  #allocation1 [shape = 'u32[144,128]{1,0:T(1,128)}', space=vmem, size = 0x12000, scoped, tag = 'internal scratch']
  #allocation2 [shape = 'bf16[3,16,32]{2,1,0:T(16,128)(2,1)}', space=vmem, size = 0x3000, scoped, tag = 'scratch operand']
  #allocation3 [shape = 'f32[1]{0:T(128)S(6)}', space=smem, size = 0x200, scoped, tag = 'scoped memory for tpu_custom_call.1']
  %s0 = inlined_call_operand.vmem [shape: f32[3], index: 0, kind: input, shape index: {}]
  %s1 = inlined_call_operand.<no memory space> [shape: f32[1], index: 1, kind: input, shape index: {}]
  %s2 = inlined_call_operand.vmem [shape: bf16[32,16], index: 2, kind: input, shape index: {}]
  %s3 = inlined_call_operand.vmem [shape: bf16[16,32], index: 3, kind: input, shape index: {}]
  %s4 = inlined_call_operand.hbm [shape: f32[2,3,16,16], index: 4, kind: input, shape index: {}]
  %s5 = inlined_call_operand.hbm [shape: f32[2,3,32,32], index: 5, kind: output, shape index: {}]
  %s6 = sld [smem:[#allocation0]]
  $region65: #{tpu_custom_call.1} parent=0
    _
  %s8 = ssub.s32 1, %s6
  %s9 = scalar_select 0, %s8, %s6
  %10 = sst [smem:[#allocation3]] %s1
  $region1: #{tpu_custom_call.1} parent=0
    #allocation4 [shape = 'u8[512]{0}', space=smem, size = 0x200, scoped, tag = 'input window, operand 0, single buffered']
    #allocation5 [shape = 's32[2]{0}', space=sflag, size = 0x8, scoped, tag = 'scoped memory for tpu_custom_call.1']
    #allocation6 [shape = 's32[2]{0}', space=sflag, size = 0x8, scoped, tag = 'scoped memory for tpu_custom_call.1']
    #allocation7 [shape = 's32[2]{0}', space=sflag, size = 0x8, scoped, tag = 'scoped memory for tpu_custom_call.1']
    #allocation8 [shape = 'u8[49152]{0}', space=vmem, size = 0xc000, scoped, tag = 'input window, operand 4']
    #allocation9 [shape = 'u8[98304]{0}', space=vmem, size = 0x18000, scoped, tag = 'output window, operand 0']
    %11 = vsyncpa [#allocation7], 0
    %12 = vsyncpa [#allocation5], 0
    %s13 = scalar_lea.sflag [#allocation5], 1
    %14 = vsyncpa %s13, 0
    %15 = vsyncpa [#allocation6], 0
    %s16 = scalar_lea.sflag [#allocation6], 1
    %17 = vsyncpa %s16, 0
    loop: start=0, step=1, limit=4
    $region2: #{tpu_custom_call.1} parent=1 // loop_pre_header
      _
    $region3: #{tpu_custom_call.1} parent=1 // loop_header
      %s19 = sphi 0, %s23
      %p20 = scmp.ge.s32.totalorder %s19, 4
      %s26 = sphi 0, %s38
      %s27 = sphi 0, %s34
      %s28 = sphi 0, %s26
      %s29 = sphi 0, %s27
      %s30 = sphi 0, %s28
      %s31 = sphi 0, %s29
      %s39 = sphi 0, %s39
      %s41 = sphi 0, %s39
      %s42 = sphi 0, %s41
      %s56 = sphi 0, %s42
      %s60 = sphi 0, %s60
      %s62 = sphi 0, %s60
      %s63 = sphi 0, %s62
      %s77 = sphi 0, %s63
      %s83 = sphi 0, %s85
      %s86 = sphi 0, %s83
      %s87 = sphi 0, %s86
      %s103 = sphi 0, %s87
      %s107 = sphi 0, %s107
      %s109 = sphi 0, %s107
      %s110 = sphi 0, %s109
      %s124 = sphi 0, %s110
      %s130 = sphi 0, %s132
      %s133 = sphi 0, %s130
      %s134 = sphi 0, %s133
      %s150 = sphi 0, %s134
      %s158 = sphi 0, %s160
      %s161 = sphi 0, %s158
      %s162 = sphi 0, %s161
      %s178 = sphi 0, %s162
    $region4: #{tpu_custom_call.1} parent=1 // loop_header_branch
      %22 = sbr.rel (%p20) target = $region8
    $region5: #{tpu_custom_call.1} parent=1 // loop_body
      %s24 = ssub.s32 %s19, 1
      %s25 = ssub.s32 %s19, 2
      %s32 = sadd.s32 1, %s27
      %p33 = scmp.ge.s32.totalorder %s32, 1
      %s34 = scalar_select %p33, 0, %s32
      %s35 = sadd.s32 1, %s26
      %s36 = scalar_select %p33, %s35, %s26
      %p37 = scmp.ge.s32.totalorder %s36, 2
      %s38 = scalar_select %p37, 0, %s36
      %s40 = sadd.s32 %s39, 1
      %p43 = scmp.eq.s32.totalorder %s19, 1
      %p44 = scmp.ne.s32.totalorder %s39, %s41
      %p45 = scmp.eq.s32.totalorder %s19, 0
      %p46 = por %p44, %p45
      %p47 = scmp.ne.s32.totalorder %s39, %s41
      %p48 = scmp.eq.s32.totalorder %s24, 1
      %p49 = por %p47, %p48
      %p50 = scmp.ne.s32.totalorder %s41, %s42
      %p51 = scmp.eq.s32.totalorder %s24, 0
      %p52 = por %p50, %p51
      %p53 = scmp.ne.s32.totalorder %s41, %s42
      %p54 = scmp.eq.s32.totalorder %s25, 1
      %p55 = por %p53, %p54
      %p57 = scmp.ne.s32.totalorder %s42, %s56
      %p58 = scmp.eq.s32.totalorder %s25, 0
      %p59 = por %p57, %p58
      %s61 = sadd.s32 %s60, 1
      %p64 = scmp.eq.s32.totalorder %s19, 1
      %p65 = scmp.ne.s32.totalorder %s60, %s62
      %p66 = scmp.eq.s32.totalorder %s19, 0
      %p67 = por %p65, %p66
      %p68 = scmp.ne.s32.totalorder %s60, %s62
      %p69 = scmp.eq.s32.totalorder %s24, 1
      %p70 = por %p68, %p69
      %p71 = scmp.ne.s32.totalorder %s62, %s63
      %p72 = scmp.eq.s32.totalorder %s24, 0
      %p73 = por %p71, %p72
      %p74 = scmp.ne.s32.totalorder %s62, %s63
      %p75 = scmp.eq.s32.totalorder %s25, 1
      %p76 = por %p74, %p75
      %p78 = scmp.ne.s32.totalorder %s63, %s77
      %p79 = scmp.eq.s32.totalorder %s25, 0
      %p80 = por %p78, %p79
      %s81 = ssub.s32 %s27, %s34
      %p82 = scmp.eq.s32.totalorder %s81, 0
      %s84 = sadd.s32 %s83, 1
      %s85 = scalar_select %p82, %s83, %s84
      %p88 = pneg %p82
      %p89 = scmp.eq.s32.totalorder %s19, 1
      %p90 = por %p88, %p89
      %p91 = scmp.ne.s32.totalorder %s83, %s86
      %p92 = scmp.eq.s32.totalorder %s19, 0
      %p93 = por %p91, %p92
      %p94 = scmp.ne.s32.totalorder %s83, %s86
      %p95 = scmp.eq.s32.totalorder %s24, 1
      %p96 = por %p94, %p95
      %p97 = scmp.ne.s32.totalorder %s86, %s87
      %p98 = scmp.eq.s32.totalorder %s24, 0
      %p99 = por %p97, %p98
      %p100 = scmp.ne.s32.totalorder %s86, %s87
      %p101 = scmp.eq.s32.totalorder %s25, 1
      %p102 = por %p100, %p101
      %p104 = scmp.ne.s32.totalorder %s87, %s103
      %p105 = scmp.eq.s32.totalorder %s25, 0
      %p106 = por %p104, %p105
      %s108 = sadd.s32 %s107, 1
      %p111 = scmp.eq.s32.totalorder %s19, 1
      %p112 = scmp.ne.s32.totalorder %s107, %s109
      %p113 = scmp.eq.s32.totalorder %s19, 0
      %p114 = por %p112, %p113
      %p115 = scmp.ne.s32.totalorder %s107, %s109
      %p116 = scmp.eq.s32.totalorder %s24, 1
      %p117 = por %p115, %p116
      %p118 = scmp.ne.s32.totalorder %s109, %s110
      %p119 = scmp.eq.s32.totalorder %s24, 0
      %p120 = por %p118, %p119
      %p121 = scmp.ne.s32.totalorder %s109, %s110
      %p122 = scmp.eq.s32.totalorder %s25, 1
      %p123 = por %p121, %p122
      %p125 = scmp.ne.s32.totalorder %s110, %s124
      %p126 = scmp.eq.s32.totalorder %s25, 0
      %p127 = por %p125, %p126
      %s128 = ssub.s32 %s26, %s38
      %p129 = scmp.eq.s32.totalorder %s128, 0
      %s131 = sadd.s32 %s130, 1
      %s132 = scalar_select %p129, %s130, %s131
      %p135 = pneg %p129
      %p136 = scmp.eq.s32.totalorder %s19, 1
      %p137 = por %p135, %p136
      %p138 = scmp.ne.s32.totalorder %s130, %s133
      %p139 = scmp.eq.s32.totalorder %s19, 0
      %p140 = por %p138, %p139
      %p141 = scmp.ne.s32.totalorder %s130, %s133
      %p142 = scmp.eq.s32.totalorder %s24, 1
      %p143 = por %p141, %p142
      %p144 = scmp.ne.s32.totalorder %s133, %s134
      %p145 = scmp.eq.s32.totalorder %s24, 0
      %p146 = por %p144, %p145
      %p147 = scmp.ne.s32.totalorder %s133, %s134
      %p148 = scmp.eq.s32.totalorder %s25, 1
      %p149 = por %p147, %p148
      %p151 = scmp.ne.s32.totalorder %s134, %s150
      %p152 = scmp.eq.s32.totalorder %s25, 0
      %p153 = por %p151, %p152
      %s154 = ssub.s32 %s26, %s38
      %s155 = ssub.s32 %s27, %s34
      %s156 = sor.u32 %s154, %s155
      %p157 = scmp.eq.s32.totalorder %s156, 0
      %s159 = sadd.s32 %s158, 1
      %s160 = scalar_select %p157, %s158, %s159
      %p163 = pneg %p157
      %p164 = scmp.eq.s32.totalorder %s19, 1
      %p165 = por %p163, %p164
      %p166 = scmp.ne.s32.totalorder %s158, %s161
      %p167 = scmp.eq.s32.totalorder %s19, 0
      %p168 = por %p166, %p167
      %p169 = scmp.ne.s32.totalorder %s158, %s161
      %p170 = scmp.eq.s32.totalorder %s24, 1
      %p171 = por %p169, %p170
      %p172 = scmp.ne.s32.totalorder %s161, %s162
      %p173 = scmp.eq.s32.totalorder %s24, 0
      %p174 = por %p172, %p173
      %p175 = scmp.ne.s32.totalorder %s161, %s162
      %p176 = scmp.eq.s32.totalorder %s25, 1
      %p177 = por %p175, %p176
      %p179 = scmp.ne.s32.totalorder %s162, %s178
      %p180 = scmp.eq.s32.totalorder %s25, 0
      %p181 = por %p179, %p180
      %p182 = scmp.le.s32.totalorder 1, %s19
      %p183 = scmp.lt.s32.totalorder %s19, 3
      %p184 = pnand %p182, %p183
      %p185 = pneg %p184
      // Predicated region
      $region9: #{tpu_custom_call.1} parent=5 // pred_check
        _
      $region10: #{tpu_custom_call.1} parent=5 // pred_check_branch
        %187 = sbr.rel (%p184) target = $region12
      $region11: #{tpu_custom_call.1} parent=5 // pred_region
        %s188 = ssub.s32 %s19, 1
        // Predicated region
        $region13: #{tpu_custom_call.1} parent=11 // pred_check
          %p189 = pneg %p52
        $region14: #{tpu_custom_call.1} parent=11 // pred_check_branch
          %191 = sbr.rel (%p189) target = $region16
        $region15: #{tpu_custom_call.1} parent=11 // pred_region
          %s193 = ssub.s32 16, 16
          %194 = vsyncadd [#allocation7], %s193
          %s196 = sshll.u32 %s0, 4
          %s197 = int_to_ptr.vmem [resolvable:$true] %s196
          %199 = dma.vmem_to_smem %s197, 16, [#allocation4], [#allocation7]
        $region16: #{tpu_custom_call.1} parent=11 // pred_fallthru
          _
        // Predicated region
        $region17: #{tpu_custom_call.1} parent=11 // pred_check
          %p200 = pneg %p73
        $region18: #{tpu_custom_call.1} parent=11 // pred_check_branch
          %202 = sbr.rel (%p200) target = $region20
        $region19: #{tpu_custom_call.1} parent=11 // pred_region
          _
        $region20: #{tpu_custom_call.1} parent=11 // pred_fallthru
          _
        // Predicated region
        $region21: #{tpu_custom_call.1} parent=11 // pred_check
          %p203 = pneg %p99
        $region22: #{tpu_custom_call.1} parent=11 // pred_check_branch
          %205 = sbr.rel (%p203) target = $region24
        $region23: #{tpu_custom_call.1} parent=11 // pred_region
          %s206 = smul.u32 4, %s29
          %p207 = scmp.lt.s32.totalorder %s206, 3
          %s208 = scalar_select %p207, %s206, 3
          %s209 = smul.addr %s208, 4
          %s210 = scalar_lea.vmem %s2, %s209
          %s211 = smul.u32 4, %s29
        $region24: #{tpu_custom_call.1} parent=11 // pred_fallthru
          _
        // Predicated region
        $region25: #{tpu_custom_call.1} parent=11 // pred_check
          %p212 = pneg %p120
        $region26: #{tpu_custom_call.1} parent=11 // pred_check_branch
          %214 = sbr.rel (%p212) target = $region28
        $region27: #{tpu_custom_call.1} parent=11 // pred_region
          _
        $region28: #{tpu_custom_call.1} parent=11 // pred_fallthru
          _
      $region12: #{tpu_custom_call.1} parent=5 // pred_fallthru
        _
      %p215 = scmp.lt.s32.totalorder %s19, 2
      // Predicated region
      $region29: #{tpu_custom_call.1} parent=5 // pred_check
        %p216 = pneg %p215
      $region30: #{tpu_custom_call.1} parent=5 // pred_check_branch
        %218 = sbr.rel (%p216) target = $region32
      $region31: #{tpu_custom_call.1} parent=5 // pred_region
        // Predicated region
        $region33: #{tpu_custom_call.1} parent=31 // pred_check
          %p219 = pneg %p140
        $region34: #{tpu_custom_call.1} parent=31 // pred_check_branch
          %221 = sbr.rel (%p219) target = $region36
        $region35: #{tpu_custom_call.1} parent=31 // pred_region
          %s222 = sand.u32 %s130, 1
          %s223 = scalar_lea.sflag [#allocation5], %s222
          %s224 = sand.u32 %s130, 1
          %s225 = smul.addr %s224, 48
          %s226 = scalar_lea.vmem [#allocation8], %s225
          %s228 = ssub.s32 768, 768
          %229 = vsyncadd %s223, %s228
          %s230 = smul.addr %s26, 6
          %s231 = smul.addr %s230, 128
          %s232 = scalar_lea.hbm %s4, %s231
          %s233 = sshll.u32 %s226, 4
          %s234 = int_to_ptr.vmem [resolvable:$true] %s233
          %239 = dma.hbm_to_vmem [thread:$0]  %s232, 768, %s234, %s223, 128, 128, 8
        $region36: #{tpu_custom_call.1} parent=31 // pred_fallthru
          _
      $region32: #{tpu_custom_call.1} parent=5 // pred_fallthru
        _
      %p240 = scmp.le.s32.totalorder 1, %s19
      %p241 = scmp.lt.s32.totalorder %s19, 3
      %p242 = pnand %p240, %p241
      %p243 = pneg %p242
      // Predicated region
      $region37: #{tpu_custom_call.1} parent=5 // pred_check
        _
      $region38: #{tpu_custom_call.1} parent=5 // pred_check_branch
        %245 = sbr.rel (%p242) target = $region40
      $region39: #{tpu_custom_call.1} parent=5 // pred_region
        %s246 = ssub.s32 %s19, 1
        // Predicated region
        $region41: #{tpu_custom_call.1} parent=39 // pred_check
          %p247 = pneg %p52
        $region42: #{tpu_custom_call.1} parent=39 // pred_check_branch
          %249 = sbr.rel (%p247) target = $region44
        $region43: #{tpu_custom_call.1} parent=39 // pred_region
          %250 = dma.done [#allocation7], 16
        $region44: #{tpu_custom_call.1} parent=39 // pred_fallthru
          _
        %s251 = sand.u32 %s133, 1
        %s252 = scalar_lea.sflag [#allocation5], %s251
        %s253 = sand.u32 %s133, 1
        %s254 = smul.addr %s253, 48
        %s255 = scalar_lea.vmem [#allocation8], %s254
        // Predicated region
        $region45: #{tpu_custom_call.1} parent=39 // pred_check
          %p256 = pneg %p146
        $region46: #{tpu_custom_call.1} parent=39 // pred_check_branch
          %258 = sbr.rel (%p256) target = $region48
        $region47: #{tpu_custom_call.1} parent=39 // pred_region
          %259 = dma.done %s252, 768
        $region48: #{tpu_custom_call.1} parent=39 // pred_fallthru
          _
        %260 = sfence
        %p261 = pneg %p52
        %p262 = pneg %p49
        %p263 = pneg %p73
        %p264 = pneg %p70
        %s265 = smul.u32 4, %s29
        %p266 = scmp.lt.s32.totalorder %s265, 3
        %s267 = scalar_select %p266, %s265, 3
        %s268 = smul.addr %s267, 4
        %s269 = scalar_lea.vmem %s2, %s268
        %p270 = pneg %p99
        %p271 = pneg %p96
        %p272 = pneg %p120
        %p273 = pneg %p117
        %s274 = sand.u32 %s133, 1
        %s275 = scalar_lea.sflag [#allocation5], %s274
        %s276 = sand.u32 %s133, 1
        %s277 = smul.addr %s276, 48
        %s278 = scalar_lea.vmem [#allocation8], %s277
        %p279 = pneg %p146
        %p280 = pneg %p143
        %p281 = pneg %p174
        %p282 = pneg %p171
        %s283 = sand.u32 %s161, 1
        %s284 = scalar_lea.sflag [#allocation6], %s283
        %s285 = sand.u32 %s161, 1
        %s286 = smul.addr %s285, 96
        %s287 = scalar_lea.vmem [#allocation9], %s286
        %s288 = smul.u32 4, %s29
        %p289 = scmp.lt.s32.totalorder %s288, 3
        %s290 = scalar_select %p289, %s288, 3
        %s291 = smul.addr %s290, 4
        %s292 = scalar_lea.vmem %s2, %s291
        %s293 = smul.u32 4, %s29
        %s294 = smul.u32 4, %s29
        %p296 = scmp.eq.s32.totalorder %s29, 0
        // Predicated region
        $region49: #{tpu_custom_call.1} parent=39 // pred_check
          %p297 = pneg %p296
        $region50: #{tpu_custom_call.1} parent=39 // pred_check_branch
          %299 = sbr.rel (%p297) target = $region52
        $region51: #{tpu_custom_call.1} parent=39 // pred_region
          %v300 = vld [vmem:[%s255] sm:$0xff]
          %v301 = vld [vmem:[%s255 + $0x8] sm:$0xff]
          %s302 = sld [smem:[#allocation4]]
          %v303 = vstv %s302
          %v304 = vmul.f32 %v300, %v303
          %v305 = vmul.f32 %v301, %v303
          %s306 = sld [smem:[#allocation3]]
          %vm307 = vcmp.gt.f32.partialorder %v304, 0.0
          %vm308 = vcmp.gt.f32.partialorder %v305, 0.0
          %v309 = vsel %vm307, %v304, 1.0
          %v310 = vsel %vm308, %v305, 1.0
          %v311 = vlog2.pop %v309
          %v312 = vmul.f32 %v311, 0.6931472
          %v313 = vlog2.pop %v310
          %v314 = vmul.f32 %v313, 0.6931472
          %v315 = vstv %s306
          %v316 = vmul.f32 %v315, %v312
          %v317 = vmul.f32 %v315, %v314
          %v318 = vmul.f32 %v316, 1.442695
          %v319 = vpow.pop %v318
          %v320 = vmul.f32 %v317, 1.442695
          %v321 = vpow.pop %v320
          %v322 = vsel %vm307, %v319, 0.0
          %v323 = vsel %vm308, %v321, 0.0
          %v324 = vpack.c.bf16 %v323, %v322
          %v325 = vld [vmem:[%s3] sm:$0xf]
          %v326 = vld [vmem:[%s3 + $0x4] sm:$0xf]
          %v329 = vunpack.c.l.b16 %v325
          %v330 = vunpack.c.l.b16 %v326
          %v331 = vpack.c.b16 %v330, %v329
          %vm333 = vcmask 130048
          %v335 = vsel %vm333, %v324, 0
          %337 = vmatprep.subr.bf16.mxu0 0
          %338 = vmatpush1.bf16.msra.mxu0 %v331
          %339 = vmatprep.subr.bf16.mxu0 0
          %340 = vmatpush1.bf16.msra.mxu0 0
          %341 = vmatprep.subr.bf16.mxu0 0
          %342 = vmatpush1.bf16.msra.mxu0 0
          %343 = vmatprep.subr.bf16.mxu0 0
          %344 = vmatpush1.bf16.msra.mxu0 0
          %345 = vmatprep.subr.bf16.mxu0 0
          %346 = vmatpush1.bf16.msra.mxu0 0
          %347 = vmatprep.subr.bf16.mxu0 0
          %348 = vmatpush1.bf16.msra.mxu0 0
          %349 = vmatprep.subr.bf16.mxu0 0
          %350 = vmatpush1.bf16.msra.mxu0 0
          %351 = vmatprep.subr.bf16.mxu0 0
          %352 = vmatpush1.bf16.msra.mxu0 0
          %353 = vmatprep.subr.bf16.mxu0 0
          %354 = vmatpush1.bf16.msra.mxu0 0
          %355 = vmatprep.subr.bf16.mxu0 0
          %356 = vmatpush1.bf16.msra.mxu0 0
          %357 = vmatprep.subr.bf16.mxu0 0
          %358 = vmatpush1.bf16.msra.mxu0 0
          %359 = vmatprep.subr.bf16.mxu0 0
          %360 = vmatpush1.bf16.msra.mxu0 0
          %361 = vmatprep.subr.bf16.mxu0 0
          %362 = vmatpush1.bf16.msra.mxu0 0
          %363 = vmatprep.subr.bf16.mxu0 0
          %364 = vmatpush1.bf16.msra.mxu0 0
          %365 = vmatprep.subr.bf16.mxu0 0
          %366 = vmatpush1.bf16.msra.mxu0 0
          %367 = vmatprep.subr.bf16.mxu0 0
          %368 = vmatpush1.bf16.msra.mxu0 0
          %369 = vmatprep.mubr.bf16.mxu0 0
          %370 = vmatmul.mubr.bf16.gmra.mrb[0].mxu0 %v335
          %v371 = vpop.f32.mrb[0].mxu0
          %v372 = vadd.f32 0.0, %v371
          %v373 = vpop.f32.mrb[0].mxu0
          %v374 = vpop.f32.mrb[0].mxu0
          %v375 = vadd.f32 0.0, %v374
          %v376 = vpop.f32.mrb[0].mxu0
          %377 = vdwg.mxu0
          %v378 = vpack.c.bf16 %v375, %v372
          %vm379 = vcmask 261120
          %380 = vst.msk [vmem:[#allocation2] sm:$0xff] %vm379, %v378
          %s381 = scalar_lea.vmem %s255, 16 [#allocation8]
          %v382 = vld [vmem:[%s381] sm:$0xff]
          %v383 = vld [vmem:[%s381 + $0x8] sm:$0xff]
          %s384 = sld [smem:[#allocation4 + $0x1]]
          %v385 = vstv %s384
          %v386 = vmul.f32 %v382, %v385
          %v387 = vmul.f32 %v383, %v385
          %s388 = sld [smem:[#allocation3]]
          %vm389 = vcmp.gt.f32.partialorder %v386, 0.0
          %vm390 = vcmp.gt.f32.partialorder %v387, 0.0
          %v391 = vsel %vm389, %v386, 1.0
          %v392 = vsel %vm390, %v387, 1.0
          %v393 = vlog2.pop %v391
          %v394 = vmul.f32 %v393, 0.6931472
          %v395 = vlog2.pop %v392
          %v396 = vmul.f32 %v395, 0.6931472
          %v397 = vstv %s388
          %v398 = vmul.f32 %v397, %v394
          %v399 = vmul.f32 %v397, %v396
          %v400 = vmul.f32 %v398, 1.442695
          %v401 = vpow.pop %v400
          %v402 = vmul.f32 %v399, 1.442695
          %v403 = vpow.pop %v402
          %v404 = vsel %vm389, %v401, 0.0
          %v405 = vsel %vm390, %v403, 0.0
          %v406 = vpack.c.bf16 %v405, %v404
          %v407 = vld [vmem:[%s3] sm:$0xf]
          %v408 = vld [vmem:[%s3 + $0x4] sm:$0xf]
          %v411 = vunpack.c.l.b16 %v407
          %v412 = vunpack.c.l.b16 %v408
          %v413 = vpack.c.b16 %v412, %v411
          %v416 = vsel %vm333, %v406, 0
          %418 = vmatprep.subr.bf16.mxu0 0
          %419 = vmatpush1.bf16.msra.mxu0 %v413
          %420 = vmatprep.subr.bf16.mxu0 0
          %421 = vmatpush1.bf16.msra.mxu0 0
          %422 = vmatprep.subr.bf16.mxu0 0
          %423 = vmatpush1.bf16.msra.mxu0 0
          %424 = vmatprep.subr.bf16.mxu0 0
          %425 = vmatpush1.bf16.msra.mxu0 0
          %426 = vmatprep.subr.bf16.mxu0 0
          %427 = vmatpush1.bf16.msra.mxu0 0
          %428 = vmatprep.subr.bf16.mxu0 0
          %429 = vmatpush1.bf16.msra.mxu0 0
          %430 = vmatprep.subr.bf16.mxu0 0
          %431 = vmatpush1.bf16.msra.mxu0 0
          %432 = vmatprep.subr.bf16.mxu0 0
          %433 = vmatpush1.bf16.msra.mxu0 0
          %434 = vmatprep.subr.bf16.mxu0 0
          %435 = vmatpush1.bf16.msra.mxu0 0
          %436 = vmatprep.subr.bf16.mxu0 0
          %437 = vmatpush1.bf16.msra.mxu0 0
          %438 = vmatprep.subr.bf16.mxu0 0
          %439 = vmatpush1.bf16.msra.mxu0 0
          %440 = vmatprep.subr.bf16.mxu0 0
          %441 = vmatpush1.bf16.msra.mxu0 0
          %442 = vmatprep.subr.bf16.mxu0 0
          %443 = vmatpush1.bf16.msra.mxu0 0
          %444 = vmatprep.subr.bf16.mxu0 0
          %445 = vmatpush1.bf16.msra.mxu0 0
          %446 = vmatprep.subr.bf16.mxu0 0
          %447 = vmatpush1.bf16.msra.mxu0 0
          %448 = vmatprep.subr.bf16.mxu0 0
          %449 = vmatpush1.bf16.msra.mxu0 0
          %450 = vmatprep.mubr.bf16.mxu0 0
          %451 = vmatmul.mubr.bf16.gmra.mrb[0].mxu0 %v416
          %v452 = vpop.f32.mrb[0].mxu0
          %v453 = vadd.f32 0.0, %v452
          %v454 = vpop.f32.mrb[0].mxu0
          %v455 = vpop.f32.mrb[0].mxu0
          %v456 = vadd.f32 0.0, %v455
          %v457 = vpop.f32.mrb[0].mxu0
          %458 = vdwg.mxu0
          %v459 = vpack.c.bf16 %v456, %v453
          %s460 = scalar_lea.vmem [#allocation2], 8
          %461 = vst.msk [vmem:[%s460] sm:$0xff] %vm379, %v459
          %s462 = scalar_lea.vmem %s255, 32 [#allocation8]
          %v463 = vld [vmem:[%s462] sm:$0xff]
          %v464 = vld [vmem:[%s462 + $0x8] sm:$0xff]
          %s465 = sld [smem:[#allocation4 + $0x2]]
          %v466 = vstv %s465
          %v467 = vmul.f32 %v463, %v466
          %v468 = vmul.f32 %v464, %v466
          %s469 = sld [smem:[#allocation3]]
          %vm470 = vcmp.gt.f32.partialorder %v467, 0.0
          %vm471 = vcmp.gt.f32.partialorder %v468, 0.0
          %v472 = vsel %vm470, %v467, 1.0
          %v473 = vsel %vm471, %v468, 1.0
          %v474 = vlog2.pop %v472
          %v475 = vmul.f32 %v474, 0.6931472
          %v476 = vlog2.pop %v473
          %v477 = vmul.f32 %v476, 0.6931472
          %v478 = vstv %s469
          %v479 = vmul.f32 %v478, %v475
          %v480 = vmul.f32 %v478, %v477
          %v481 = vmul.f32 %v479, 1.442695
          %v482 = vpow.pop %v481
          %v483 = vmul.f32 %v480, 1.442695
          %v484 = vpow.pop %v483
          %v485 = vsel %vm470, %v482, 0.0
          %v486 = vsel %vm471, %v484, 0.0
          %v487 = vpack.c.bf16 %v486, %v485
          %v488 = vld [vmem:[%s3] sm:$0xf]
          %v489 = vld [vmem:[%s3 + $0x4] sm:$0xf]
          %v492 = vunpack.c.l.b16 %v488
          %v493 = vunpack.c.l.b16 %v489
          %v494 = vpack.c.b16 %v493, %v492
          %v497 = vsel %vm333, %v487, 0
          %499 = vmatprep.subr.bf16.mxu0 0
          %500 = vmatpush1.bf16.msra.mxu0 %v494
          %501 = vmatprep.subr.bf16.mxu0 0
          %502 = vmatpush1.bf16.msra.mxu0 0
          %503 = vmatprep.subr.bf16.mxu0 0
          %504 = vmatpush1.bf16.msra.mxu0 0
          %505 = vmatprep.subr.bf16.mxu0 0
          %506 = vmatpush1.bf16.msra.mxu0 0
          %507 = vmatprep.subr.bf16.mxu0 0
          %508 = vmatpush1.bf16.msra.mxu0 0
          %509 = vmatprep.subr.bf16.mxu0 0
          %510 = vmatpush1.bf16.msra.mxu0 0
          %511 = vmatprep.subr.bf16.mxu0 0
          %512 = vmatpush1.bf16.msra.mxu0 0
          %513 = vmatprep.subr.bf16.mxu0 0
          %514 = vmatpush1.bf16.msra.mxu0 0
          %515 = vmatprep.subr.bf16.mxu0 0
          %516 = vmatpush1.bf16.msra.mxu0 0
          %517 = vmatprep.subr.bf16.mxu0 0
          %518 = vmatpush1.bf16.msra.mxu0 0
          %519 = vmatprep.subr.bf16.mxu0 0
          %520 = vmatpush1.bf16.msra.mxu0 0
          %521 = vmatprep.subr.bf16.mxu0 0
          %522 = vmatpush1.bf16.msra.mxu0 0
          %523 = vmatprep.subr.bf16.mxu0 0
          %524 = vmatpush1.bf16.msra.mxu0 0
          %525 = vmatprep.subr.bf16.mxu0 0
          %526 = vmatpush1.bf16.msra.mxu0 0
          %527 = vmatprep.subr.bf16.mxu0 0
          %528 = vmatpush1.bf16.msra.mxu0 0
          %529 = vmatprep.subr.bf16.mxu0 0
          %530 = vmatpush1.bf16.msra.mxu0 0
          %531 = vmatprep.mubr.bf16.mxu0 0
          %532 = vmatmul.mubr.bf16.gmra.mrb[0].mxu0 %v497
          %v533 = vpop.f32.mrb[0].mxu0
          %v534 = vadd.f32 0.0, %v533
          %v535 = vpop.f32.mrb[0].mxu0
          %v536 = vpop.f32.mrb[0].mxu0
          %v537 = vadd.f32 0.0, %v536
          %v538 = vpop.f32.mrb[0].mxu0
          %539 = vdwg.mxu0
          %v540 = vpack.c.bf16 %v537, %v534
          %s541 = scalar_lea.vmem [#allocation2], 16
          %542 = vst.msk [vmem:[%s541] sm:$0xff] %vm379, %v540
        $region52: #{tpu_custom_call.1} parent=39 // pred_fallthru
          _
        %v543 = vld [vmem:[%s292] sm:$0xf]
        %v544 = vld [vmem:[%s292 + $0x4] sm:$0xf]
        %v545 = vld [vmem:[%s292 + $0x8] sm:$0xf]
        %v546 = vld [vmem:[%s292 + $0xc] sm:$0xf]
        %v547 = vld [vmem:[#allocation2] sm:$0xff]
        %v552 = vunpack.c.l.b16 %v543
        %v553 = vunpack.c.l.b16 %v544
        %v554 = vunpack.c.l.b16 %v545
        %v555 = vunpack.c.l.b16 %v546
        %v556 = vpack.c.b16 %v553, %v552
        %v557 = vpack.c.b16 %v555, %v554
        %vm558 = vcmask 130048
        %v560 = vsel %vm558, %v556, 0
        %v563 = vsel %vm558, %v557, 0
        %565 = vmatprep.subr.bf16.mxu0 0
        %566 = vmatpush1.bf16.msra.mxu0 %v547
        %567 = vmatprep.subr.bf16.mxu0 0
        %568 = vmatpush1.bf16.msra.mxu0 0
        %569 = vmatprep.subr.bf16.mxu0 0
        %570 = vmatpush1.bf16.msra.mxu0 0
        %571 = vmatprep.subr.bf16.mxu0 0
        %572 = vmatpush1.bf16.msra.mxu0 0
        %573 = vmatprep.subr.bf16.mxu0 0
        %574 = vmatpush1.bf16.msra.mxu0 0
        %575 = vmatprep.subr.bf16.mxu0 0
        %576 = vmatpush1.bf16.msra.mxu0 0
        %577 = vmatprep.subr.bf16.mxu0 0
        %578 = vmatpush1.bf16.msra.mxu0 0
        %579 = vmatprep.subr.bf16.mxu0 0
        %580 = vmatpush1.bf16.msra.mxu0 0
        %581 = vmatprep.subr.bf16.mxu0 0
        %582 = vmatpush1.bf16.msra.mxu0 0
        %583 = vmatprep.subr.bf16.mxu0 0
        %584 = vmatpush1.bf16.msra.mxu0 0
        %585 = vmatprep.subr.bf16.mxu0 0
        %586 = vmatpush1.bf16.msra.mxu0 0
        %587 = vmatprep.subr.bf16.mxu0 0
        %588 = vmatpush1.bf16.msra.mxu0 0
        %589 = vmatprep.subr.bf16.mxu0 0
        %590 = vmatpush1.bf16.msra.mxu0 0
        %591 = vmatprep.subr.bf16.mxu0 0
        %592 = vmatpush1.bf16.msra.mxu0 0
        %593 = vmatprep.subr.bf16.mxu0 0
        %594 = vmatpush1.bf16.msra.mxu0 0
        %595 = vmatprep.subr.bf16.mxu0 0
        %596 = vmatpush1.bf16.msra.mxu0 0
        %597 = vmatprep.mubr.bf16.mxu0 0
        %598 = vmatmul.mubr.bf16.gmra.mrb[0].mxu0 %v560
        %v599 = vpop.f32.mrb[0].mxu0
        %v600 = vadd.f32 0.0, %v599
        %v601 = vpop.f32.mrb[0].mxu0
        %v602 = vpop.f32.mrb[0].mxu0
        %v603 = vadd.f32 0.0, %v602
        %v604 = vpop.f32.mrb[0].mxu0
        %605 = vmatprep.mubr.bf16.mxu0 0
        %606 = vmatmul.mubr.bf16.gmra.mrb[0].mxu0 %v563
        %v607 = vpop.f32.mrb[0].mxu0
        %v608 = vadd.f32 0.0, %v607
        %v609 = vpop.f32.mrb[0].mxu0
        %v610 = vpop.f32.mrb[0].mxu0
        %v611 = vadd.f32 0.0, %v610
        %v612 = vpop.f32.mrb[0].mxu0
        %613 = vdwg.mxu0
        %vm614 = vcmask 261120
        %615 = vst.msk [vmem:[%s287] sm:$0xff] %vm614, %v600
        %616 = vst.msk [vmem:[%s287 + $0x8] sm:$0xff] %vm614, %v603
        %617 = vst.msk [vmem:[%s287 + $0x10] sm:$0xff] %vm614, %v608
        %618 = vst.msk [vmem:[%s287 + $0x18] sm:$0xff] %vm614, %v611
        %v619 = vld [vmem:[%s292] sm:$0xf]
        %v620 = vld [vmem:[%s292 + $0x4] sm:$0xf]
        %v621 = vld [vmem:[%s292 + $0x8] sm:$0xf]
        %v622 = vld [vmem:[%s292 + $0xc] sm:$0xf]
        %s623 = scalar_lea.vmem [#allocation2], 8
        %v624 = vld [vmem:[%s623] sm:$0xff]
        %v629 = vunpack.c.l.b16 %v619
        %v630 = vunpack.c.l.b16 %v620
        %v631 = vunpack.c.l.b16 %v621
        %v632 = vunpack.c.l.b16 %v622
        %v633 = vpack.c.b16 %v630, %v629
        %v634 = vpack.c.b16 %v632, %v631
        %v636 = vsel %vm558, %v633, 0
        %v639 = vsel %vm558, %v634, 0
        %641 = vmatprep.subr.bf16.mxu0 0
        %642 = vmatpush1.bf16.msra.mxu0 %v624
        %643 = vmatprep.subr.bf16.mxu0 0
        %644 = vmatpush1.bf16.msra.mxu0 0
        %645 = vmatprep.subr.bf16.mxu0 0
        %646 = vmatpush1.bf16.msra.mxu0 0
        %647 = vmatprep.subr.bf16.mxu0 0
        %648 = vmatpush1.bf16.msra.mxu0 0
        %649 = vmatprep.subr.bf16.mxu0 0
        %650 = vmatpush1.bf16.msra.mxu0 0
        %651 = vmatprep.subr.bf16.mxu0 0
        %652 = vmatpush1.bf16.msra.mxu0 0
        %653 = vmatprep.subr.bf16.mxu0 0
        %654 = vmatpush1.bf16.msra.mxu0 0
        %655 = vmatprep.subr.bf16.mxu0 0
        %656 = vmatpush1.bf16.msra.mxu0 0
        %657 = vmatprep.subr.bf16.mxu0 0
        %658 = vmatpush1.bf16.msra.mxu0 0
        %659 = vmatprep.subr.bf16.mxu0 0
        %660 = vmatpush1.bf16.msra.mxu0 0
        %661 = vmatprep.subr.bf16.mxu0 0
        %662 = vmatpush1.bf16.msra.mxu0 0
        %663 = vmatprep.subr.bf16.mxu0 0
        %664 = vmatpush1.bf16.msra.mxu0 0
        %665 = vmatprep.subr.bf16.mxu0 0
        %666 = vmatpush1.bf16.msra.mxu0 0
        %667 = vmatprep.subr.bf16.mxu0 0
        %668 = vmatpush1.bf16.msra.mxu0 0
        %669 = vmatprep.subr.bf16.mxu0 0
        %670 = vmatpush1.bf16.msra.mxu0 0
        %671 = vmatprep.subr.bf16.mxu0 0
        %672 = vmatpush1.bf16.msra.mxu0 0
        %673 = vmatprep.mubr.bf16.mxu0 0
        %674 = vmatmul.mubr.bf16.gmra.mrb[0].mxu0 %v636
        %v675 = vpop.f32.mrb[0].mxu0
        %v676 = vadd.f32 0.0, %v675
        %v677 = vpop.f32.mrb[0].mxu0
        %v678 = vpop.f32.mrb[0].mxu0
        %v679 = vadd.f32 0.0, %v678
        %v680 = vpop.f32.mrb[0].mxu0
        %681 = vmatprep.mubr.bf16.mxu0 0
        %682 = vmatmul.mubr.bf16.gmra.mrb[0].mxu0 %v639
        %v683 = vpop.f32.mrb[0].mxu0
        %v684 = vadd.f32 0.0, %v683
        %v685 = vpop.f32.mrb[0].mxu0
        %v686 = vpop.f32.mrb[0].mxu0
        %v687 = vadd.f32 0.0, %v686
        %v688 = vpop.f32.mrb[0].mxu0
        %689 = vdwg.mxu0
        %s690 = scalar_lea.vmem %s287, 32 [#allocation9]
        %691 = vst.msk [vmem:[%s690] sm:$0xff] %vm614, %v676
        %692 = vst.msk [vmem:[%s690 + $0x8] sm:$0xff] %vm614, %v679
        %693 = vst.msk [vmem:[%s690 + $0x10] sm:$0xff] %vm614, %v684
        %694 = vst.msk [vmem:[%s690 + $0x18] sm:$0xff] %vm614, %v687
        %v695 = vld [vmem:[%s292] sm:$0xf]
        %v696 = vld [vmem:[%s292 + $0x4] sm:$0xf]
        %v697 = vld [vmem:[%s292 + $0x8] sm:$0xf]
        %v698 = vld [vmem:[%s292 + $0xc] sm:$0xf]
        %s699 = scalar_lea.vmem [#allocation2], 16
        %v700 = vld [vmem:[%s699] sm:$0xff]
        %v705 = vunpack.c.l.b16 %v695
        %v706 = vunpack.c.l.b16 %v696
        %v707 = vunpack.c.l.b16 %v697
        %v708 = vunpack.c.l.b16 %v698
        %v709 = vpack.c.b16 %v706, %v705
        %v710 = vpack.c.b16 %v708, %v707
        %v712 = vsel %vm558, %v709, 0
        %v715 = vsel %vm558, %v710, 0
        %717 = vmatprep.subr.bf16.mxu0 0
        %718 = vmatpush1.bf16.msra.mxu0 %v700
        %719 = vmatprep.subr.bf16.mxu0 0
        %720 = vmatpush1.bf16.msra.mxu0 0
        %721 = vmatprep.subr.bf16.mxu0 0
        %722 = vmatpush1.bf16.msra.mxu0 0
        %723 = vmatprep.subr.bf16.mxu0 0
        %724 = vmatpush1.bf16.msra.mxu0 0
        %725 = vmatprep.subr.bf16.mxu0 0
        %726 = vmatpush1.bf16.msra.mxu0 0
        %727 = vmatprep.subr.bf16.mxu0 0
        %728 = vmatpush1.bf16.msra.mxu0 0
        %729 = vmatprep.subr.bf16.mxu0 0
        %730 = vmatpush1.bf16.msra.mxu0 0
        %731 = vmatprep.subr.bf16.mxu0 0
        %732 = vmatpush1.bf16.msra.mxu0 0
        %733 = vmatprep.subr.bf16.mxu0 0
        %734 = vmatpush1.bf16.msra.mxu0 0
        %735 = vmatprep.subr.bf16.mxu0 0
        %736 = vmatpush1.bf16.msra.mxu0 0
        %737 = vmatprep.subr.bf16.mxu0 0
        %738 = vmatpush1.bf16.msra.mxu0 0
        %739 = vmatprep.subr.bf16.mxu0 0
        %740 = vmatpush1.bf16.msra.mxu0 0
        %741 = vmatprep.subr.bf16.mxu0 0
        %742 = vmatpush1.bf16.msra.mxu0 0
        %743 = vmatprep.subr.bf16.mxu0 0
        %744 = vmatpush1.bf16.msra.mxu0 0
        %745 = vmatprep.subr.bf16.mxu0 0
        %746 = vmatpush1.bf16.msra.mxu0 0
        %747 = vmatprep.subr.bf16.mxu0 0
        %748 = vmatpush1.bf16.msra.mxu0 0
        %749 = vmatprep.mubr.bf16.mxu0 0
        %750 = vmatmul.mubr.bf16.gmra.mrb[0].mxu0 %v712
        %v751 = vpop.f32.mrb[0].mxu0
        %v752 = vadd.f32 0.0, %v751
        %v753 = vpop.f32.mrb[0].mxu0
        %v754 = vpop.f32.mrb[0].mxu0
        %v755 = vadd.f32 0.0, %v754
        %v756 = vpop.f32.mrb[0].mxu0
        %757 = vmatprep.mubr.bf16.mxu0 0
        %758 = vmatmul.mubr.bf16.gmra.mrb[0].mxu0 %v715
        %v759 = vpop.f32.mrb[0].mxu0
        %v760 = vadd.f32 0.0, %v759
        %v761 = vpop.f32.mrb[0].mxu0
        %v762 = vpop.f32.mrb[0].mxu0
        %v763 = vadd.f32 0.0, %v762
        %v764 = vpop.f32.mrb[0].mxu0
        %765 = vdwg.mxu0
        %s766 = scalar_lea.vmem %s287, 64 [#allocation9]
        %767 = vst.msk [vmem:[%s766] sm:$0xff] %vm614, %v752
        %768 = vst.msk [vmem:[%s766 + $0x8] sm:$0xff] %vm614, %v755
        %769 = vst.msk [vmem:[%s766 + $0x10] sm:$0xff] %vm614, %v760
        %770 = vst.msk [vmem:[%s766 + $0x18] sm:$0xff] %vm614, %v763
        %s771 = sand.u32 %s161, 1
        %s772 = scalar_lea.sflag [#allocation6], %s771
        %s773 = sand.u32 %s161, 1
        %s774 = smul.addr %s773, 96
        %s775 = scalar_lea.vmem [#allocation9], %s774
        // Predicated region
        $region53: #{tpu_custom_call.1} parent=39 // pred_check
          %p776 = pneg %p171
        $region54: #{tpu_custom_call.1} parent=39 // pred_check_branch
          %778 = sbr.rel (%p776) target = $region56
        $region55: #{tpu_custom_call.1} parent=39 // pred_region
          %s779 = smul.u32 4, %s29
          %s781 = ssub.s32 1536, 1536
          %782 = vsyncadd %s772, %s781
          %s783 = smul.addr %s28, 12
          %s784 = sadd.s32 %s779, %s783
          %s785 = smul.addr %s784, 128
          %s786 = scalar_lea.hbm %s5, %s785
          %s787 = sshll.u32 %s775, 4
          %s788 = int_to_ptr.vmem [resolvable:$true] %s787
          %793 = dma.vmem_to_hbm [thread:$0]  %s788, 1536, %s786, %s772, 128, 128, 8
        $region56: #{tpu_custom_call.1} parent=39 // pred_fallthru
          _
      $region40: #{tpu_custom_call.1} parent=5 // pred_fallthru
        _
      %p794 = scmp.le.s32.totalorder 2, %s19
      // Predicated region
      $region57: #{tpu_custom_call.1} parent=5 // pred_check
        %p795 = pneg %p794
      $region58: #{tpu_custom_call.1} parent=5 // pred_check_branch
        %797 = sbr.rel (%p795) target = $region60
      $region59: #{tpu_custom_call.1} parent=5 // pred_region
        %s798 = ssub.s32 %s19, 2
        // Predicated region
        $region61: #{tpu_custom_call.1} parent=59 // pred_check
          %p799 = pneg %p177
        $region62: #{tpu_custom_call.1} parent=59 // pred_check_branch
          %801 = sbr.rel (%p799) target = $region64
        $region63: #{tpu_custom_call.1} parent=59 // pred_region
          %s802 = sand.u32 %s162, 1
          %s803 = scalar_lea.sflag [#allocation6], %s802
          %s804 = sand.u32 %s162, 1
          %s805 = smul.addr %s804, 96
          %s806 = scalar_lea.vmem [#allocation9], %s805
          %807 = dma.done %s803, 1536
        $region64: #{tpu_custom_call.1} parent=59 // pred_fallthru
          _
      $region60: #{tpu_custom_call.1} parent=5 // pred_fallthru
        _
    $region6: #{tpu_custom_call.1} parent=1 // loop_footer
      %s23 = sadd.s32 1, %s19
    $region7: #{tpu_custom_call.1} parent=1 // loop_footer_branch
      %18 = sbr.rel target = $region3
    $region8: #{tpu_custom_call.1} parent=1 // loop_exit
      _
    %808 = vsyncpa [#allocation5], 1
    %s809 = scalar_lea.sflag [#allocation5], 1
    %810 = vsyncpa %s809, 1
    %811 = vsyncpa [#allocation6], 1
    %s812 = scalar_lea.sflag [#allocation6], 1
    %813 = vsyncpa %s812, 1
    %814 = vsyncpa [#allocation7], 1
    %s815 = scalar_lea.sflag [#allocation7], 1
    %816 = vsyncpa %s815, 1

</llo_original>
